<compile_context>
chip_gen: v6e
topology: v6e:2x2x1
jax: 0.10.0
libtpu: 0.0.40
codegen_flags: <defaults>
</compile_context>

<pallas_src>
import functools

import jax
import jax.numpy as jnp
from jax.experimental import pallas as pl
from jax.experimental.pallas import tpu as pltpu


def _round_up(x, m):
    return ((x + m - 1) // m) * m


# ---------------------------------------------------------------------------
# Fused Pallas kernel: streamed im2col spatial-sum -> conv weight -> GAP scale
# -> 4x (Linear with folded BN -> LeakyReLU) head.
# ---------------------------------------------------------------------------
def _make_net_kernel(n_layers, ts, inv_spatial):
    """Grid = (batch, spatial_tiles); spatial axis is the reduction axis.

    Per spatial tile:  acc(8,K) += ones(8,ts) @ col_tile(ts,K)   (bf16 MXU op,
    f32 accumulation; the ones-LHS trick does the row reduction on the MXU so
    the VPU/XLU stay idle and the stream is purely DMA-bound).
    On the last tile: scale by 1/spatial, apply the 7x7 conv weight once per
    image, run the folded-BN FC head entirely in VMEM, store the logits.
    """
    def kernel(col_ref, wconv_ref, *rest):
        head_refs = rest[:2 * n_layers]
        out_ref = rest[2 * n_layers]
        acc_ref = rest[2 * n_layers + 1]

        t = pl.program_id(1)

        @pl.when(t == 0)
        def _init():
            acc_ref[...] = jnp.zeros_like(acc_ref)

        # (8, ts) bf16 @ (ts, K) bf16 -> (8, K) f32: every row is the column
        # sum of this tile.  Zero-padded spatial rows contribute nothing.
        ones_lhs = jnp.ones((8, ts), jnp.bfloat16)
        acc_ref[...] += jnp.dot(ones_lhs, col_ref[0],
                                preferred_element_type=jnp.float32)

        @pl.when(t == pl.num_programs(1) - 1)
        def _finalize():
            # Keep all 8 (identical) rows so every matmul below has M=8.
            pooled = acc_ref[...] * inv_spatial                 # (8, K) f32
            # 7x7/s2/p3 conv applied to the pooled patch row (GAP∘conv
            # linearity; conv has no bias, Dropout2d is identity in eval).
            h = jnp.dot(pooled, wconv_ref[...],
                        preferred_element_type=jnp.float32)     # (8, Cout_pad)
            # FC head: Linear (BN folded in) -> LeakyReLU(0.01); Dropout == id.
            for layer in range(n_layers):
                w = head_refs[2 * layer][...]                   # (Fi_p, Fo_p) f32
                b = head_refs[2 * layer + 1][...]               # (1, Fo_p)   f32
                y = jnp.dot(h, w, preferred_element_type=jnp.float32) + b
                h = jnp.where(y > 0.0, y, 0.01 * y)
            out_ref[0] = h[0:1, :]                              # (1, C_pad)
    return kernel


def _pallas_net(col, wconv, head_params, *, ts, spatial):
    n, s_pad, k = col.shape
    n_layers = len(head_params)
    c_pad = head_params[-1][0].shape[1]

    in_specs = [
        # Streamed col tiles: minor dim equals full K (no lane padding stored
        # in HBM), second-minor ts is a multiple of 16.
        pl.BlockSpec((1, ts, k), lambda b, t: (b, t, 0)),
        # Conv weight: constant-indexed, stays resident in VMEM.
        pl.BlockSpec(wconv.shape, lambda b, t: (0, 0)),
    ]
    args = [col, wconv]
    for w, bias in head_params:                      # resident head params
        in_specs.append(pl.BlockSpec(w.shape, lambda b, t: (0, 0)))
        in_specs.append(pl.BlockSpec(bias.shape, lambda b, t: (0, 0)))
        args.append(w)
        args.append(bias)

    kernel = _make_net_kernel(n_layers, ts, 1.0 / spatial)
    return pl.pallas_call(
        kernel,
        out_shape=jax.ShapeDtypeStruct((n, 1, c_pad), jnp.float32),
        grid_spec=pltpu.PrefetchScalarGridSpec(
            num_scalar_prefetch=0,
            grid=(n, s_pad // ts),
            in_specs=in_specs,
            out_specs=pl.BlockSpec((1, 1, c_pad), lambda b, t: (b, 0, 0)),
            scratch_shapes=[pltpu.VMEM((8, k), jnp.float32)],
        ),
        compiler_params=pltpu.CompilerParams(
            dimension_semantics=("parallel", "arbitrary"),
            vmem_limit_bytes=32 * 1024 * 1024,       # safe on v7x (64 MiB VMEM)
        ),
    )(*args)


# ---------------------------------------------------------------------------
# Forward-pass glue (bf16 channels-last im2col, parameter prep)
# ---------------------------------------------------------------------------
def _im2col_bf16(x_nchw, kh=7, kw=7, stride=2, pad=3):
    """Patch extraction for the 7x7/s2/p3 first conv, ONE fused XLA op.

    Produced directly in bf16 with the (Cin*KH*KW) feature axis LAST (NHWC
    out spec), so no transpose/astype HBM copies are needed.  Feature
    ordering is channel-major (Cin, KH, KW), matching
    w_conv.reshape(Cout, Cin*KH*KW).
    """
    n, cin, h, w = x_nchw.shape
    oh = (h + 2 * pad - kh) // stride + 1
    ow = (w + 2 * pad - kw) // stride + 1
    patches = jax.lax.conv_general_dilated_patches(
        x_nchw.astype(jnp.bfloat16), filter_shape=(kh, kw),
        window_strides=(stride, stride),
        padding=((pad, pad), (pad, pad)),
        dimension_numbers=("NCHW", "OIHW", "NHWC"))  # (N, OH, OW, Cin*KH*KW)
    col = patches.reshape(n, oh * ow, cin * kh * kw)  # contiguous, metadata only
    return col, oh * ow


def closest_power_of_2(n):
    res = 1
    prev = 1
    while res <= n:
        prev = res
        res *= 2
    return prev


def make_fc_head_params(key, num_ftrs, n_classes):
    """Replicates Net.fc(num_ftrs, n_classes, 'multiple') parameter shapes."""
    dims = []
    inp = num_ftrs
    out = closest_power_of_2(inp)
    while out > n_classes:
        dims.append((inp, out))
        inp = out
        out = int(out / 2)
    dims.append((inp, n_classes))

    params = []
    for fi, fo in dims:
        key, k1, k2, k3, k4, k5, k6 = jax.random.split(key, 7)
        w = jax.random.normal(k1, (fi, fo), jnp.float32) * 0.05
        b = jax.random.normal(k2, (1, fo), jnp.float32) * 0.05
        gamma = 1.0 + 0.1 * jax.random.normal(k3, (1, fo), jnp.float32)
        beta = 0.1 * jax.random.normal(k4, (1, fo), jnp.float32)
        mu = 0.1 * jax.random.normal(k5, (1, fo), jnp.float32)
        var = jnp.abs(jax.random.normal(k6, (1, fo), jnp.float32)) + 0.5
        params.append((w, b, gamma, beta, mu, var))
    return params


def fold_and_pad_head_params(head_params, lane=128):
    """Folds eval-mode BatchNorm1d into each Linear and pads to 128 lanes.

    Kept in f32: the head now runs once per image inside the conv kernel's
    finalize, so its cost is negligible and f32 maximizes fidelity.
    """
    prepped = []
    for w, b, gamma, beta, mu, var in head_params:
        scale = gamma * jax.lax.rsqrt(var + 1e-5)        # (1, fo)
        w_eff = w * scale                                # column-scaled weight
        b_eff = (b - mu) * scale + beta                  # fused bias
        fi, fo = w.shape
        fi_p, fo_p = _round_up(fi, lane), _round_up(fo, lane)
        w_p = jnp.zeros((fi_p, fo_p), jnp.float32).at[:fi, :fo].set(w_eff)
        b_p = jnp.zeros((1, fo_p), jnp.float32).at[:, :fo].set(b_eff)
        prepped.append((w_p, b_p))
    return tuple(prepped)


def prep_conv_weight(w_conv, lane=128):
    """(Cout, Cin, KH, KW) -> f32 (K, Cout_pad) matmul operand.

    K (=Cin*KH*KW) is left un-padded (the pooled row matmul handles it);
    Cout is padded to 128 lanes only.
    """
    cout, cin, kh, kw = w_conv.shape
    k = cin * kh * kw
    w_mat = w_conv.reshape(cout, k).T                    # (K, Cout), (C,KH,KW) order
    cout_pad = _round_up(cout, lane)
    return jnp.zeros((k, cout_pad), jnp.float32).at[:, :cout].set(w_mat)


@functools.partial(jax.jit, static_argnames=("n_classes",))
def net_forward(x_nchw, wconv_mat, head_params, *, n_classes):
    n = x_nchw.shape[0]

    # im2col once, bf16, channels-last (no extra HBM copies).
    col, spatial = _im2col_bf16(x_nchw)

    # Large spatial tile (multiple of 16 for bf16 packing) to amortize the
    # per-grid-step overhead; ~0.8 MiB/buffer at ts=2048 with K=196.
    ts = min(2048, _round_up(spatial, 16))
    s_pad = _round_up(spatial, ts)
    if s_pad != spatial:
        col = jnp.pad(col, ((0, 0), (0, s_pad - spatial), (0, 0)))

    # Single fused Pallas kernel: conv (via GAP∘conv linearity) + GAP + head.
    logits_p = _pallas_net(col, wconv_mat, head_params, ts=ts, spatial=spatial)
    return logits_p.reshape(n, -1)[:, :n_classes]


# ---------------------------------------------------------------------------
if __name__ == "__main__":
    key = jax.random.PRNGKey(0)
    N, CIN, H, W = 2, 4, 16, 16
    COUT = 64                                   # resnet-style first conv width
    N_CLASSES = 10

    key, kx, kw, khd = jax.random.split(key, 4)
    x = jax.random.normal(kx, (N, CIN, H, W), jnp.float32)               # NCHW
    conv_w = jax.random.normal(kw, (COUT, CIN, 7, 7), jnp.float32) * 0.05
    head_raw = make_fc_head_params(khd, num_ftrs=COUT, n_classes=N_CLASSES)

    wconv_mat = prep_conv_weight(conv_w)                 # (196, 128) f32
    head_prepped = fold_and_pad_head_params(head_raw)    # 4 x ((*,128) f32, (1,128) f32)

    out = net_forward(x, wconv_mat, head_prepped, n_classes=N_CLASSES)
    out = jax.block_until_ready(out)
    assert out.shape == (N, N_CLASSES), out.shape
    print("KERNEL_OK")
</pallas_src>

<mosaic_0001>
module attributes {stable_mosaic.version = 11 : i64} {
  func.func @kernel(%arg0: i32, %arg1: i32, %arg2: memref<1x64x196xbf16, #tpu.memory_space<vmem>>, %arg3: memref<196x128xf32, #tpu.memory_space<vmem>>, %arg4: memref<128x128xf32, #tpu.memory_space<vmem>>, %arg5: memref<1x128xf32, #tpu.memory_space<vmem>>, %arg6: memref<128x128xf32, #tpu.memory_space<vmem>>, %arg7: memref<1x128xf32, #tpu.memory_space<vmem>>, %arg8: memref<128x128xf32, #tpu.memory_space<vmem>>, %arg9: memref<1x128xf32, #tpu.memory_space<vmem>>, %arg10: memref<128x128xf32, #tpu.memory_space<vmem>>, %arg11: memref<1x128xf32, #tpu.memory_space<vmem>>, %arg12: memref<1x1x128xf32, #tpu.memory_space<vmem>>, %arg13: memref<8x196xf32, #tpu.memory_space<vmem>>) attributes {dimension_semantics = [#tpu.dimension_semantics<parallel>, #tpu.dimension_semantics<arbitrary>], iteration_bounds = array<i64: 2, 1>, scalar_prefetch = 0 : i64, scratch_operands = 1 : i64, tpu.core_type = #tpu.core_type<tc>, window_params = [{transform_indices = @transform_0, window_bounds = array<i64: 1, 64, 196>}, {pipeline_mode = #tpu.pipeline_mode<synchronous>, transform_indices = @transform_1, window_bounds = array<i64: 196, 128>}, {pipeline_mode = #tpu.pipeline_mode<synchronous>, transform_indices = @transform_2, window_bounds = array<i64: 128, 128>}, {pipeline_mode = #tpu.pipeline_mode<synchronous>, transform_indices = @transform_3, window_bounds = array<i64: 1, 128>}, {pipeline_mode = #tpu.pipeline_mode<synchronous>, transform_indices = @transform_4, window_bounds = array<i64: 128, 128>}, {pipeline_mode = #tpu.pipeline_mode<synchronous>, transform_indices = @transform_5, window_bounds = array<i64: 1, 128>}, {pipeline_mode = #tpu.pipeline_mode<synchronous>, transform_indices = @transform_6, window_bounds = array<i64: 128, 128>}, {pipeline_mode = #tpu.pipeline_mode<synchronous>, transform_indices = @transform_7, window_bounds = array<i64: 1, 128>}, {pipeline_mode = #tpu.pipeline_mode<synchronous>, transform_indices = @transform_8, window_bounds = array<i64: 128, 128>}, {pipeline_mode = #tpu.pipeline_mode<synchronous>, transform_indices = @transform_9, window_bounds = array<i64: 1, 128>}, {transform_indices = @transform_10, window_bounds = array<i64: 1, 1, 128>}]} {
    %c0_i32 = arith.constant 0 : i32
    %0 = arith.cmpi eq, %arg1, %c0_i32 : i32
    %1 = arith.extui %0 : i1 to i32
    %c0_i32_0 = arith.constant 0 : i32
    %2 = arith.cmpi ne, %1, %c0_i32_0 : i32
    scf.if %2 {
      %cst_10 = arith.constant 0.000000e+00 : f32
      %13 = vector.broadcast %cst_10 : f32 to vector<8x196xf32>
      %c0_11 = arith.constant 0 : index
      %c0_12 = arith.constant 0 : index
      %14 = vector.load %arg13[%c0_11, %c0_12] : memref<8x196xf32, #tpu.memory_space<vmem>>, vector<8x196xf32>
      tpu.vector_store %arg13[%c0_11, %c0_12], %13 {strides = array<i32>} : memref<8x196xf32, #tpu.memory_space<vmem>>, vector<8x196xf32>,
    } else {
    }
    %cst = arith.constant 1.000000e+00 : bf16
    %3 = vector.broadcast %cst : bf16 to vector<8x64xbf16>
    %c0 = arith.constant 0 : index
    %c0_1 = arith.constant 0 : index
    %4 = vector.load %arg13[%c0, %c0_1] : memref<8x196xf32, #tpu.memory_space<vmem>>, vector<8x196xf32>
    %c0_2 = arith.constant 0 : index
    %c0_3 = arith.constant 0 : index
    %c0_4 = arith.constant 0 : index
    %5 = vector.load %arg2[%c0_2, %c0_3, %c0_4] : memref<1x64x196xbf16, #tpu.memory_space<vmem>>, vector<1x64x196xbf16>
    %6 = vector.shape_cast %5 : vector<1x64x196xbf16> to vector<64x196xbf16>
    %cst_5 = arith.constant dense<0.000000e+00> : vector<8x196xf32>
    %7 = tpu.matmul %3, %6, %cst_5 {dimension_numbers = #tpu.dot_dimension_numbers<[1], [0], [0], [1], [0, 0, 1, 1], [], []>} : vector<8x64xbf16>, vector<64x196xbf16>, vector<8x196xf32> -> vector<8x196xf32>
    %8 = arith.addf %4, %7 : vector<8x196xf32>
    %c0_6 = arith.constant 0 : index
    %c0_7 = arith.constant 0 : index
    %9 = vector.load %arg13[%c0_6, %c0_7] : memref<8x196xf32, #tpu.memory_space<vmem>>, vector<8x196xf32>
    tpu.vector_store %arg13[%c0_6, %c0_7], %8 {strides = array<i32>} : memref<8x196xf32, #tpu.memory_space<vmem>>, vector<8x196xf32>,
    %c0_i32_8 = arith.constant 0 : i32
    %10 = arith.cmpi eq, %arg1, %c0_i32_8 : i32
    %11 = arith.extui %10 : i1 to i32
    %c0_i32_9 = arith.constant 0 : i32
    %12 = arith.cmpi ne, %11, %c0_i32_9 : i32
    scf.if %12 {
      %c0_10 = arith.constant 0 : index
      %c0_11 = arith.constant 0 : index
      %13 = vector.load %arg13[%c0_10, %c0_11] : memref<8x196xf32, #tpu.memory_space<vmem>>, vector<8x196xf32>
      %cst_12 = arith.constant 1.562500e-02 : f32
      %14 = vector.broadcast %cst_12 : f32 to vector<8x196xf32>
      %15 = arith.mulf %13, %14 : vector<8x196xf32>
      %c0_13 = arith.constant 0 : index
      %c0_14 = arith.constant 0 : index
      %16 = vector.load %arg3[%c0_13, %c0_14] : memref<196x128xf32, #tpu.memory_space<vmem>>, vector<196x128xf32>
      %cst_15 = arith.constant dense<0.000000e+00> : vector<8x128xf32>
      %17 = tpu.matmul %15, %16, %cst_15 {dimension_numbers = #tpu.dot_dimension_numbers<[1], [0], [0], [1], [0, 0, 1, 1], [], []>} : vector<8x196xf32>, vector<196x128xf32>, vector<8x128xf32> -> vector<8x128xf32>
      %c0_16 = arith.constant 0 : index
      %c0_17 = arith.constant 0 : index
      %18 = vector.load %arg4[%c0_16, %c0_17] : memref<128x128xf32, #tpu.memory_space<vmem>>, vector<128x128xf32>
      %c0_18 = arith.constant 0 : index
      %c0_19 = arith.constant 0 : index
      %19 = vector.load %arg5[%c0_18, %c0_19] : memref<1x128xf32, #tpu.memory_space<vmem>>, vector<1x128xf32>
      %cst_20 = arith.constant dense<0.000000e+00> : vector<8x128xf32>
      %20 = tpu.matmul %17, %18, %cst_20 {dimension_numbers = #tpu.dot_dimension_numbers<[1], [0], [0], [1], [0, 0, 1, 1], [], []>} : vector<8x128xf32>, vector<128x128xf32>, vector<8x128xf32> -> vector<8x128xf32>
      %21 = vector.broadcast %19 : vector<1x128xf32> to vector<8x128xf32>
      %22 = arith.addf %20, %21 : vector<8x128xf32>
      %cst_21 = arith.constant 0.000000e+00 : f32
      %23 = vector.broadcast %cst_21 : f32 to vector<8x128xf32>
      %24 = arith.cmpf ogt, %22, %23 : vector<8x128xf32>
      %cst_22 = arith.constant 0.00999999977 : f32
      %25 = vector.broadcast %cst_22 : f32 to vector<8x128xf32>
      %26 = arith.mulf %25, %22 : vector<8x128xf32>
      %27 = arith.select %24, %22, %26 : vector<8x128xi1>, vector<8x128xf32>
      %c0_23 = arith.constant 0 : index
      %c0_24 = arith.constant 0 : index
      %28 = vector.load %arg6[%c0_23, %c0_24] : memref<128x128xf32, #tpu.memory_space<vmem>>, vector<128x128xf32>
      %c0_25 = arith.constant 0 : index
      %c0_26 = arith.constant 0 : index
      %29 = vector.load %arg7[%c0_25, %c0_26] : memref<1x128xf32, #tpu.memory_space<vmem>>, vector<1x128xf32>
      %cst_27 = arith.constant dense<0.000000e+00> : vector<8x128xf32>
      %30 = tpu.matmul %27, %28, %cst_27 {dimension_numbers = #tpu.dot_dimension_numbers<[1], [0], [0], [1], [0, 0, 1, 1], [], []>} : vector<8x128xf32>, vector<128x128xf32>, vector<8x128xf32> -> vector<8x128xf32>
      %31 = vector.broadcast %29 : vector<1x128xf32> to vector<8x128xf32>
      %32 = arith.addf %30, %31 : vector<8x128xf32>
      %cst_28 = arith.constant 0.000000e+00 : f32
      %33 = vector.broadcast %cst_28 : f32 to vector<8x128xf32>
      %34 = arith.cmpf ogt, %32, %33 : vector<8x128xf32>
      %cst_29 = arith.constant 0.00999999977 : f32
      %35 = vector.broadcast %cst_29 : f32 to vector<8x128xf32>
      %36 = arith.mulf %35, %32 : vector<8x128xf32>
      %37 = arith.select %34, %32, %36 : vector<8x128xi1>, vector<8x128xf32>
      %c0_30 = arith.constant 0 : index
      %c0_31 = arith.constant 0 : index
      %38 = vector.load %arg8[%c0_30, %c0_31] : memref<128x128xf32, #tpu.memory_space<vmem>>, vector<128x128xf32>
      %c0_32 = arith.constant 0 : index
      %c0_33 = arith.constant 0 : index
      %39 = vector.load %arg9[%c0_32, %c0_33] : memref<1x128xf32, #tpu.memory_space<vmem>>, vector<1x128xf32>
      %cst_34 = arith.constant dense<0.000000e+00> : vector<8x128xf32>
      %40 = tpu.matmul %37, %38, %cst_34 {dimension_numbers = #tpu.dot_dimension_numbers<[1], [0], [0], [1], [0, 0, 1, 1], [], []>} : vector<8x128xf32>, vector<128x128xf32>, vector<8x128xf32> -> vector<8x128xf32>
      %41 = vector.broadcast %39 : vector<1x128xf32> to vector<8x128xf32>
      %42 = arith.addf %40, %41 : vector<8x128xf32>
      %cst_35 = arith.constant 0.000000e+00 : f32
      %43 = vector.broadcast %cst_35 : f32 to vector<8x128xf32>
      %44 = arith.cmpf ogt, %42, %43 : vector<8x128xf32>
      %cst_36 = arith.constant 0.00999999977 : f32
      %45 = vector.broadcast %cst_36 : f32 to vector<8x128xf32>
      %46 = arith.mulf %45, %42 : vector<8x128xf32>
      %47 = arith.select %44, %42, %46 : vector<8x128xi1>, vector<8x128xf32>
      %c0_37 = arith.constant 0 : index
      %c0_38 = arith.constant 0 : index
      %48 = vector.load %arg10[%c0_37, %c0_38] : memref<128x128xf32, #tpu.memory_space<vmem>>, vector<128x128xf32>
      %c0_39 = arith.constant 0 : index
      %c0_40 = arith.constant 0 : index
      %49 = vector.load %arg11[%c0_39, %c0_40] : memref<1x128xf32, #tpu.memory_space<vmem>>, vector<1x128xf32>
      %cst_41 = arith.constant dense<0.000000e+00> : vector<8x128xf32>
      %50 = tpu.matmul %47, %48, %cst_41 {dimension_numbers = #tpu.dot_dimension_numbers<[1], [0], [0], [1], [0, 0, 1, 1], [], []>} : vector<8x128xf32>, vector<128x128xf32>, vector<8x128xf32> -> vector<8x128xf32>
      %51 = vector.broadcast %49 : vector<1x128xf32> to vector<8x128xf32>
      %52 = arith.addf %50, %51 : vector<8x128xf32>
      %cst_42 = arith.constant 0.000000e+00 : f32
      %53 = vector.broadcast %cst_42 : f32 to vector<8x128xf32>
      %54 = arith.cmpf ogt, %52, %53 : vector<8x128xf32>
      %cst_43 = arith.constant 0.00999999977 : f32
      %55 = vector.broadcast %cst_43 : f32 to vector<8x128xf32>
      %56 = arith.mulf %55, %52 : vector<8x128xf32>
      %57 = arith.select %54, %52, %56 : vector<8x128xi1>, vector<8x128xf32>
      %58 = vector.extract_strided_slice %57 {offsets = [0, 0], sizes = [1, 128], strides = [1, 1]} : vector<8x128xf32> to vector<1x128xf32>
      %c0_44 = arith.constant 0 : index
      %c0_45 = arith.constant 0 : index
      %c0_46 = arith.constant 0 : index
      %59 = vector.load %arg12[%c0_44, %c0_45, %c0_46] : memref<1x1x128xf32, #tpu.memory_space<vmem>>, vector<1x1x128xf32>
      %60 = vector.shape_cast %59 : vector<1x1x128xf32> to vector<1x128xf32>
      %61 = vector.shape_cast %58 : vector<1x128xf32> to vector<1x1x128xf32>
      tpu.vector_store %arg12[%c0_44, %c0_45, %c0_46], %61 {strides = array<i32>} : memref<1x1x128xf32, #tpu.memory_space<vmem>>, vector<1x1x128xf32>,
    } else {
    }
    return
  }
  func.func @transform_0(%arg0: i32, %arg1: i32) -> (i32, i32, i32) {
    %c0_i32 = arith.constant 0 : i32
    %c0_i32_0 = arith.constant 0 : i32
    return %arg0, %arg1, %c0_i32 : i32, i32, i32
  }
  func.func @transform_1(%arg0: i32, %arg1: i32) -> (i32, i32) {
    %c0_i32 = arith.constant 0 : i32
    %c0_i32_0 = arith.constant 0 : i32
    %c0_i32_1 = arith.constant 0 : i32
    return %c0_i32, %c0_i32_0 : i32, i32
  }
  func.func @transform_2(%arg0: i32, %arg1: i32) -> (i32, i32) {
    %c0_i32 = arith.constant 0 : i32
    %c0_i32_0 = arith.constant 0 : i32
    %c0_i32_1 = arith.constant 0 : i32
    return %c0_i32, %c0_i32_0 : i32, i32
  }
  func.func @transform_3(%arg0: i32, %arg1: i32) -> (i32, i32) {
    %c0_i32 = arith.constant 0 : i32
    %c0_i32_0 = arith.constant 0 : i32
    %c0_i32_1 = arith.constant 0 : i32
    return %c0_i32, %c0_i32_0 : i32, i32
  }
  func.func @transform_4(%arg0: i32, %arg1: i32) -> (i32, i32) {
    %c0_i32 = arith.constant 0 : i32
    %c0_i32_0 = arith.constant 0 : i32
    %c0_i32_1 = arith.constant 0 : i32
    return %c0_i32, %c0_i32_0 : i32, i32
  }
  func.func @transform_5(%arg0: i32, %arg1: i32) -> (i32, i32) {
    %c0_i32 = arith.constant 0 : i32
    %c0_i32_0 = arith.constant 0 : i32
    %c0_i32_1 = arith.constant 0 : i32
    return %c0_i32, %c0_i32_0 : i32, i32
  }
  func.func @transform_6(%arg0: i32, %arg1: i32) -> (i32, i32) {
    %c0_i32 = arith.constant 0 : i32
    %c0_i32_0 = arith.constant 0 : i32
    %c0_i32_1 = arith.constant 0 : i32
    return %c0_i32, %c0_i32_0 : i32, i32
  }
  func.func @transform_7(%arg0: i32, %arg1: i32) -> (i32, i32) {
    %c0_i32 = arith.constant 0 : i32
    %c0_i32_0 = arith.constant 0 : i32
    %c0_i32_1 = arith.constant 0 : i32
    return %c0_i32, %c0_i32_0 : i32, i32
  }
  func.func @transform_8(%arg0: i32, %arg1: i32) -> (i32, i32) {
    %c0_i32 = arith.constant 0 : i32
    %c0_i32_0 = arith.constant 0 : i32
    %c0_i32_1 = arith.constant 0 : i32
    return %c0_i32, %c0_i32_0 : i32, i32
  }
  func.func @transform_9(%arg0: i32, %arg1: i32) -> (i32, i32) {
    %c0_i32 = arith.constant 0 : i32
    %c0_i32_0 = arith.constant 0 : i32
    %c0_i32_1 = arith.constant 0 : i32
    return %c0_i32, %c0_i32_0 : i32, i32
  }
  func.func @transform_10(%arg0: i32, %arg1: i32) -> (i32, i32, i32) {
    %c0_i32 = arith.constant 0 : i32
    %c0_i32_0 = arith.constant 0 : i32
    %c0_i32_1 = arith.constant 0 : i32
    return %arg0, %c0_i32, %c0_i32_0 : i32, i32, i32
  }
}

</mosaic_0001>

<llo_original>
// kernel: net_forward.1
$region0: #{net_forward.1}
  #allocation0 [shape = 'u32[]', space=smem, size = 0x4, offset = 0x4, fixed_abs, tag = 'smem constant byte address 0x4 - core index']
  #allocation1 [shape = 'u32[144,128]{1,0:T(1,128)}', space=vmem, size = 0x12000, scoped, tag = 'internal scratch']
  #allocation2 [shape = 'f32[8,196]{1,0:T(8,128)}', space=vmem, size = 0x2000, scoped, tag = 'scratch operand']
  %s0 = inlined_call_operand.vmem [shape: bf16[2,64,196], index: 0, kind: input, shape index: {}]
  %s1 = inlined_call_operand.vmem [shape: f32[196,128], index: 1, kind: input, shape index: {}]
  %s2 = inlined_call_operand.vmem [shape: f32[128,128], index: 2, kind: input, shape index: {}]
  %s3 = inlined_call_operand.vmem [shape: f32[1,128], index: 3, kind: input, shape index: {}]
  %s4 = inlined_call_operand.vmem [shape: f32[128,128], index: 4, kind: input, shape index: {}]
  %s5 = inlined_call_operand.vmem [shape: f32[1,128], index: 5, kind: input, shape index: {}]
  %s6 = inlined_call_operand.vmem [shape: f32[128,128], index: 6, kind: input, shape index: {}]
  %s7 = inlined_call_operand.vmem [shape: f32[1,128], index: 7, kind: input, shape index: {}]
  %s8 = inlined_call_operand.vmem [shape: f32[128,128], index: 8, kind: input, shape index: {}]
  %s9 = inlined_call_operand.vmem [shape: f32[1,128], index: 9, kind: input, shape index: {}]
  %s10 = inlined_call_operand.hbm [shape: f32[2,1,128], index: 10, kind: output, shape index: {}]
  %s11 = sld [smem:[#allocation0]]
  $region81: #{net_forward.1} parent=0
    _
  %s13 = ssub.s32 1, %s11
  %s14 = scalar_select 0, %s13, %s11
  $region1: #{net_forward.1} parent=0
    #allocation3 [shape = 'u8[1024]{0}', space=vmem, size = 0x400, scoped, tag = 'output window, operand 0']
    #allocation4 [shape = 's32[2]{0}', space=sflag, size = 0x8, scoped, tag = 'scoped memory for net_forward.1']
    %15 = vsyncpa [#allocation4], 0
    %s16 = scalar_lea.sflag [#allocation4], 1
    %17 = vsyncpa %s16, 0
    loop: start=0, step=1, limit=4
    $region2: #{net_forward.1} parent=1 // loop_pre_header
      _
    $region3: #{net_forward.1} parent=1 // loop_header
      %s19 = sphi 0, %s23
      %p20 = scmp.ge.s32.totalorder %s19, 4
      %s26 = sphi 0, %s38
      %s27 = sphi 0, %s34
      %s28 = sphi 0, %s26
      %s29 = sphi 0, %s27
      %s30 = sphi 0, %s28
      %s31 = sphi 0, %s29
      %s43 = sphi 0, %s45
      %s46 = sphi 0, %s43
      %s47 = sphi 0, %s46
      %s63 = sphi 0, %s47
      %s67 = sphi 0, %s67
      %s69 = sphi 0, %s67
      %s70 = sphi 0, %s69
      %s84 = sphi 0, %s70
      %s88 = sphi 0, %s88
      %s90 = sphi 0, %s88
      %s91 = sphi 0, %s90
      %s105 = sphi 0, %s91
      %s109 = sphi 0, %s109
      %s111 = sphi 0, %s109
      %s112 = sphi 0, %s111
      %s126 = sphi 0, %s112
      %s130 = sphi 0, %s130
      %s132 = sphi 0, %s130
      %s133 = sphi 0, %s132
      %s147 = sphi 0, %s133
      %s151 = sphi 0, %s151
      %s153 = sphi 0, %s151
      %s154 = sphi 0, %s153
      %s168 = sphi 0, %s154
      %s172 = sphi 0, %s172
      %s174 = sphi 0, %s172
      %s175 = sphi 0, %s174
      %s189 = sphi 0, %s175
      %s193 = sphi 0, %s193
      %s195 = sphi 0, %s193
      %s196 = sphi 0, %s195
      %s210 = sphi 0, %s196
      %s214 = sphi 0, %s214
      %s216 = sphi 0, %s214
      %s217 = sphi 0, %s216
      %s231 = sphi 0, %s217
      %s235 = sphi 0, %s235
      %s237 = sphi 0, %s235
      %s238 = sphi 0, %s237
      %s252 = sphi 0, %s238
      %s258 = sphi 0, %s260
      %s261 = sphi 0, %s258
      %s262 = sphi 0, %s261
      %s278 = sphi 0, %s262
    $region4: #{net_forward.1} parent=1 // loop_header_branch
      %22 = sbr.rel (%p20) target = $region8
    $region5: #{net_forward.1} parent=1 // loop_body
      %s24 = ssub.s32 %s19, 1
      %s25 = ssub.s32 %s19, 2
      %s32 = sadd.s32 1, %s27
      %p33 = scmp.ge.s32.totalorder %s32, 1
      %s34 = scalar_select %p33, 0, %s32
      %s35 = sadd.s32 1, %s26
      %s36 = scalar_select %p33, %s35, %s26
      %p37 = scmp.ge.s32.totalorder %s36, 2
      %s38 = scalar_select %p37, 0, %s36
      %s39 = ssub.s32 %s26, %s38
      %s40 = ssub.s32 %s27, %s34
      %s41 = sor.u32 %s39, %s40
      %p42 = scmp.eq.s32.totalorder %s41, 0
      %s44 = sadd.s32 %s43, 1
      %s45 = scalar_select %p42, %s43, %s44
      %p48 = pneg %p42
      %p49 = scmp.eq.s32.totalorder %s19, 1
      %p50 = por %p48, %p49
      %p51 = scmp.ne.s32.totalorder %s43, %s46
      %p52 = scmp.eq.s32.totalorder %s19, 0
      %p53 = por %p51, %p52
      %p54 = scmp.ne.s32.totalorder %s43, %s46
      %p55 = scmp.eq.s32.totalorder %s24, 1
      %p56 = por %p54, %p55
      %p57 = scmp.ne.s32.totalorder %s46, %s47
      %p58 = scmp.eq.s32.totalorder %s24, 0
      %p59 = por %p57, %p58
      %p60 = scmp.ne.s32.totalorder %s46, %s47
      %p61 = scmp.eq.s32.totalorder %s25, 1
      %p62 = por %p60, %p61
      %p64 = scmp.ne.s32.totalorder %s47, %s63
      %p65 = scmp.eq.s32.totalorder %s25, 0
      %p66 = por %p64, %p65
      %s68 = sadd.s32 %s67, 1
      %p71 = scmp.eq.s32.totalorder %s19, 1
      %p72 = scmp.ne.s32.totalorder %s67, %s69
      %p73 = scmp.eq.s32.totalorder %s19, 0
      %p74 = por %p72, %p73
      %p75 = scmp.ne.s32.totalorder %s67, %s69
      %p76 = scmp.eq.s32.totalorder %s24, 1
      %p77 = por %p75, %p76
      %p78 = scmp.ne.s32.totalorder %s69, %s70
      %p79 = scmp.eq.s32.totalorder %s24, 0
      %p80 = por %p78, %p79
      %p81 = scmp.ne.s32.totalorder %s69, %s70
      %p82 = scmp.eq.s32.totalorder %s25, 1
      %p83 = por %p81, %p82
      %p85 = scmp.ne.s32.totalorder %s70, %s84
      %p86 = scmp.eq.s32.totalorder %s25, 0
      %p87 = por %p85, %p86
      %s89 = sadd.s32 %s88, 1
      %p92 = scmp.eq.s32.totalorder %s19, 1
      %p93 = scmp.ne.s32.totalorder %s88, %s90
      %p94 = scmp.eq.s32.totalorder %s19, 0
      %p95 = por %p93, %p94
      %p96 = scmp.ne.s32.totalorder %s88, %s90
      %p97 = scmp.eq.s32.totalorder %s24, 1
      %p98 = por %p96, %p97
      %p99 = scmp.ne.s32.totalorder %s90, %s91
      %p100 = scmp.eq.s32.totalorder %s24, 0
      %p101 = por %p99, %p100
      %p102 = scmp.ne.s32.totalorder %s90, %s91
      %p103 = scmp.eq.s32.totalorder %s25, 1
      %p104 = por %p102, %p103
      %p106 = scmp.ne.s32.totalorder %s91, %s105
      %p107 = scmp.eq.s32.totalorder %s25, 0
      %p108 = por %p106, %p107
      %s110 = sadd.s32 %s109, 1
      %p113 = scmp.eq.s32.totalorder %s19, 1
      %p114 = scmp.ne.s32.totalorder %s109, %s111
      %p115 = scmp.eq.s32.totalorder %s19, 0
      %p116 = por %p114, %p115
      %p117 = scmp.ne.s32.totalorder %s109, %s111
      %p118 = scmp.eq.s32.totalorder %s24, 1
      %p119 = por %p117, %p118
      %p120 = scmp.ne.s32.totalorder %s111, %s112
      %p121 = scmp.eq.s32.totalorder %s24, 0
      %p122 = por %p120, %p121
      %p123 = scmp.ne.s32.totalorder %s111, %s112
      %p124 = scmp.eq.s32.totalorder %s25, 1
      %p125 = por %p123, %p124
      %p127 = scmp.ne.s32.totalorder %s112, %s126
      %p128 = scmp.eq.s32.totalorder %s25, 0
      %p129 = por %p127, %p128
      %s131 = sadd.s32 %s130, 1
      %p134 = scmp.eq.s32.totalorder %s19, 1
      %p135 = scmp.ne.s32.totalorder %s130, %s132
      %p136 = scmp.eq.s32.totalorder %s19, 0
      %p137 = por %p135, %p136
      %p138 = scmp.ne.s32.totalorder %s130, %s132
      %p139 = scmp.eq.s32.totalorder %s24, 1
      %p140 = por %p138, %p139
      %p141 = scmp.ne.s32.totalorder %s132, %s133
      %p142 = scmp.eq.s32.totalorder %s24, 0
      %p143 = por %p141, %p142
      %p144 = scmp.ne.s32.totalorder %s132, %s133
      %p145 = scmp.eq.s32.totalorder %s25, 1
      %p146 = por %p144, %p145
      %p148 = scmp.ne.s32.totalorder %s133, %s147
      %p149 = scmp.eq.s32.totalorder %s25, 0
      %p150 = por %p148, %p149
      %s152 = sadd.s32 %s151, 1
      %p155 = scmp.eq.s32.totalorder %s19, 1
      %p156 = scmp.ne.s32.totalorder %s151, %s153
      %p157 = scmp.eq.s32.totalorder %s19, 0
      %p158 = por %p156, %p157
      %p159 = scmp.ne.s32.totalorder %s151, %s153
      %p160 = scmp.eq.s32.totalorder %s24, 1
      %p161 = por %p159, %p160
      %p162 = scmp.ne.s32.totalorder %s153, %s154
      %p163 = scmp.eq.s32.totalorder %s24, 0
      %p164 = por %p162, %p163
      %p165 = scmp.ne.s32.totalorder %s153, %s154
      %p166 = scmp.eq.s32.totalorder %s25, 1
      %p167 = por %p165, %p166
      %p169 = scmp.ne.s32.totalorder %s154, %s168
      %p170 = scmp.eq.s32.totalorder %s25, 0
      %p171 = por %p169, %p170
      %s173 = sadd.s32 %s172, 1
      %p176 = scmp.eq.s32.totalorder %s19, 1
      %p177 = scmp.ne.s32.totalorder %s172, %s174
      %p178 = scmp.eq.s32.totalorder %s19, 0
      %p179 = por %p177, %p178
      %p180 = scmp.ne.s32.totalorder %s172, %s174
      %p181 = scmp.eq.s32.totalorder %s24, 1
      %p182 = por %p180, %p181
      %p183 = scmp.ne.s32.totalorder %s174, %s175
      %p184 = scmp.eq.s32.totalorder %s24, 0
      %p185 = por %p183, %p184
      %p186 = scmp.ne.s32.totalorder %s174, %s175
      %p187 = scmp.eq.s32.totalorder %s25, 1
      %p188 = por %p186, %p187
      %p190 = scmp.ne.s32.totalorder %s175, %s189
      %p191 = scmp.eq.s32.totalorder %s25, 0
      %p192 = por %p190, %p191
      %s194 = sadd.s32 %s193, 1
      %p197 = scmp.eq.s32.totalorder %s19, 1
      %p198 = scmp.ne.s32.totalorder %s193, %s195
      %p199 = scmp.eq.s32.totalorder %s19, 0
      %p200 = por %p198, %p199
      %p201 = scmp.ne.s32.totalorder %s193, %s195
      %p202 = scmp.eq.s32.totalorder %s24, 1
      %p203 = por %p201, %p202
      %p204 = scmp.ne.s32.totalorder %s195, %s196
      %p205 = scmp.eq.s32.totalorder %s24, 0
      %p206 = por %p204, %p205
      %p207 = scmp.ne.s32.totalorder %s195, %s196
      %p208 = scmp.eq.s32.totalorder %s25, 1
      %p209 = por %p207, %p208
      %p211 = scmp.ne.s32.totalorder %s196, %s210
      %p212 = scmp.eq.s32.totalorder %s25, 0
      %p213 = por %p211, %p212
      %s215 = sadd.s32 %s214, 1
      %p218 = scmp.eq.s32.totalorder %s19, 1
      %p219 = scmp.ne.s32.totalorder %s214, %s216
      %p220 = scmp.eq.s32.totalorder %s19, 0
      %p221 = por %p219, %p220
      %p222 = scmp.ne.s32.totalorder %s214, %s216
      %p223 = scmp.eq.s32.totalorder %s24, 1
      %p224 = por %p222, %p223
      %p225 = scmp.ne.s32.totalorder %s216, %s217
      %p226 = scmp.eq.s32.totalorder %s24, 0
      %p227 = por %p225, %p226
      %p228 = scmp.ne.s32.totalorder %s216, %s217
      %p229 = scmp.eq.s32.totalorder %s25, 1
      %p230 = por %p228, %p229
      %p232 = scmp.ne.s32.totalorder %s217, %s231
      %p233 = scmp.eq.s32.totalorder %s25, 0
      %p234 = por %p232, %p233
      %s236 = sadd.s32 %s235, 1
      %p239 = scmp.eq.s32.totalorder %s19, 1
      %p240 = scmp.ne.s32.totalorder %s235, %s237
      %p241 = scmp.eq.s32.totalorder %s19, 0
      %p242 = por %p240, %p241
      %p243 = scmp.ne.s32.totalorder %s235, %s237
      %p244 = scmp.eq.s32.totalorder %s24, 1
      %p245 = por %p243, %p244
      %p246 = scmp.ne.s32.totalorder %s237, %s238
      %p247 = scmp.eq.s32.totalorder %s24, 0
      %p248 = por %p246, %p247
      %p249 = scmp.ne.s32.totalorder %s237, %s238
      %p250 = scmp.eq.s32.totalorder %s25, 1
      %p251 = por %p249, %p250
      %p253 = scmp.ne.s32.totalorder %s238, %s252
      %p254 = scmp.eq.s32.totalorder %s25, 0
      %p255 = por %p253, %p254
      %s256 = ssub.s32 %s26, %s38
      %p257 = scmp.eq.s32.totalorder %s256, 0
      %s259 = sadd.s32 %s258, 1
      %s260 = scalar_select %p257, %s258, %s259
      %p263 = pneg %p257
      %p264 = scmp.eq.s32.totalorder %s19, 1
      %p265 = por %p263, %p264
      %p266 = scmp.ne.s32.totalorder %s258, %s261
      %p267 = scmp.eq.s32.totalorder %s19, 0
      %p268 = por %p266, %p267
      %p269 = scmp.ne.s32.totalorder %s258, %s261
      %p270 = scmp.eq.s32.totalorder %s24, 1
      %p271 = por %p269, %p270
      %p272 = scmp.ne.s32.totalorder %s261, %s262
      %p273 = scmp.eq.s32.totalorder %s24, 0
      %p274 = por %p272, %p273
      %p275 = scmp.ne.s32.totalorder %s261, %s262
      %p276 = scmp.eq.s32.totalorder %s25, 1
      %p277 = por %p275, %p276
      %p279 = scmp.ne.s32.totalorder %s262, %s278
      %p280 = scmp.eq.s32.totalorder %s25, 0
      %p281 = por %p279, %p280
      %p282 = scmp.le.s32.totalorder 1, %s19
      %p283 = scmp.lt.s32.totalorder %s19, 3
      %p284 = pnand %p282, %p283
      %p285 = pneg %p284
      // Predicated region
      $region9: #{net_forward.1} parent=5 // pred_check
        _
      $region10: #{net_forward.1} parent=5 // pred_check_branch
        %287 = sbr.rel (%p284) target = $region12
      $region11: #{net_forward.1} parent=5 // pred_region
        %s288 = ssub.s32 %s19, 1
        // Predicated region
        $region13: #{net_forward.1} parent=11 // pred_check
          %p289 = pneg %p80
        $region14: #{net_forward.1} parent=11 // pred_check_branch
          %291 = sbr.rel (%p289) target = $region16
        $region15: #{net_forward.1} parent=11 // pred_region
          _
        $region16: #{net_forward.1} parent=11 // pred_fallthru
          _
        // Predicated region
        $region17: #{net_forward.1} parent=11 // pred_check
          %p292 = pneg %p101
        $region18: #{net_forward.1} parent=11 // pred_check_branch
          %294 = sbr.rel (%p292) target = $region20
        $region19: #{net_forward.1} parent=11 // pred_region
          _
        $region20: #{net_forward.1} parent=11 // pred_fallthru
          _
        // Predicated region
        $region21: #{net_forward.1} parent=11 // pred_check
          %p295 = pneg %p122
        $region22: #{net_forward.1} parent=11 // pred_check_branch
          %297 = sbr.rel (%p295) target = $region24
        $region23: #{net_forward.1} parent=11 // pred_region
          _
        $region24: #{net_forward.1} parent=11 // pred_fallthru
          _
        // Predicated region
        $region25: #{net_forward.1} parent=11 // pred_check
          %p298 = pneg %p143
        $region26: #{net_forward.1} parent=11 // pred_check_branch
          %300 = sbr.rel (%p298) target = $region28
        $region27: #{net_forward.1} parent=11 // pred_region
          _
        $region28: #{net_forward.1} parent=11 // pred_fallthru
          _
        // Predicated region
        $region29: #{net_forward.1} parent=11 // pred_check
          %p301 = pneg %p164
        $region30: #{net_forward.1} parent=11 // pred_check_branch
          %303 = sbr.rel (%p301) target = $region32
        $region31: #{net_forward.1} parent=11 // pred_region
          _
        $region32: #{net_forward.1} parent=11 // pred_fallthru
          _
        // Predicated region
        $region33: #{net_forward.1} parent=11 // pred_check
          %p304 = pneg %p185
        $region34: #{net_forward.1} parent=11 // pred_check_branch
          %306 = sbr.rel (%p304) target = $region36
        $region35: #{net_forward.1} parent=11 // pred_region
          _
        $region36: #{net_forward.1} parent=11 // pred_fallthru
          _
        // Predicated region
        $region37: #{net_forward.1} parent=11 // pred_check
          %p307 = pneg %p206
        $region38: #{net_forward.1} parent=11 // pred_check_branch
          %309 = sbr.rel (%p307) target = $region40
        $region39: #{net_forward.1} parent=11 // pred_region
          _
        $region40: #{net_forward.1} parent=11 // pred_fallthru
          _
        // Predicated region
        $region41: #{net_forward.1} parent=11 // pred_check
          %p310 = pneg %p227
        $region42: #{net_forward.1} parent=11 // pred_check_branch
          %312 = sbr.rel (%p310) target = $region44
        $region43: #{net_forward.1} parent=11 // pred_region
          _
        $region44: #{net_forward.1} parent=11 // pred_fallthru
          _
        // Predicated region
        $region45: #{net_forward.1} parent=11 // pred_check
          %p313 = pneg %p248
        $region46: #{net_forward.1} parent=11 // pred_check_branch
          %315 = sbr.rel (%p313) target = $region48
        $region47: #{net_forward.1} parent=11 // pred_region
          _
        $region48: #{net_forward.1} parent=11 // pred_fallthru
          _
      $region12: #{net_forward.1} parent=5 // pred_fallthru
        _
      %p316 = scmp.lt.s32.totalorder %s19, 2
      // Predicated region
      $region49: #{net_forward.1} parent=5 // pred_check
        %p317 = pneg %p316
      $region50: #{net_forward.1} parent=5 // pred_check_branch
        %319 = sbr.rel (%p317) target = $region52
      $region51: #{net_forward.1} parent=5 // pred_region
        // Predicated region
        $region53: #{net_forward.1} parent=51 // pred_check
          %p320 = pneg %p53
        $region54: #{net_forward.1} parent=51 // pred_check_branch
          %322 = sbr.rel (%p320) target = $region56
        $region55: #{net_forward.1} parent=51 // pred_region
          %s323 = smul.u32 8, %s27
          %p324 = scmp.lt.s32.totalorder %s26, 1
          %s325 = scalar_select %p324, %s26, 1
          %p326 = scmp.lt.s32.totalorder %s323, 7
          %s327 = scalar_select %p326, %s323, 7
          %s328 = smul.addr %s327, 2
          %s329 = smul.addr %s325, 16
          %s330 = sadd.s32 %s328, %s329
          %s331 = smul.addr %s330, 4
          %s332 = scalar_lea.vmem %s0, %s331
          %s333 = smul.u32 8, %s27
        $region56: #{net_forward.1} parent=51 // pred_fallthru
          _
      $region52: #{net_forward.1} parent=5 // pred_fallthru
        _
      %p334 = scmp.le.s32.totalorder 1, %s19
      %p335 = scmp.lt.s32.totalorder %s19, 3
      %p336 = pnand %p334, %p335
      %p337 = pneg %p336
      // Predicated region
      $region57: #{net_forward.1} parent=5 // pred_check
        _
      $region58: #{net_forward.1} parent=5 // pred_check_branch
        %339 = sbr.rel (%p336) target = $region60
      $region59: #{net_forward.1} parent=5 // pred_region
        %s340 = ssub.s32 %s19, 1
        %s341 = smul.u32 8, %s29
        %p342 = scmp.lt.s32.totalorder %s28, 1
        %s343 = scalar_select %p342, %s28, 1
        %p344 = scmp.lt.s32.totalorder %s341, 7
        %s345 = scalar_select %p344, %s341, 7
        %s346 = smul.addr %s345, 2
        %s347 = smul.addr %s343, 16
        %s348 = sadd.s32 %s346, %s347
        %s349 = smul.addr %s348, 4
        %s350 = scalar_lea.vmem %s0, %s349
        %p351 = pneg %p59
        %p352 = pneg %p56
        %p353 = pneg %p80
        %p354 = pneg %p77
        %p355 = pneg %p101
        %p356 = pneg %p98
        %p357 = pneg %p122
        %p358 = pneg %p119
        %p359 = pneg %p143
        %p360 = pneg %p140
        %p361 = pneg %p164
        %p362 = pneg %p161
        %p363 = pneg %p185
        %p364 = pneg %p182
        %p365 = pneg %p206
        %p366 = pneg %p203
        %p367 = pneg %p227
        %p368 = pneg %p224
        %p369 = pneg %p248
        %p370 = pneg %p245
        %p371 = pneg %p274
        %p372 = pneg %p271
        %s373 = sand.u32 %s261, 1
        %s374 = scalar_lea.sflag [#allocation4], %s373
        %s375 = sand.u32 %s261, 1
        %s376 = scalar_lea.vmem [#allocation3], %s375
        %s377 = smul.u32 8, %s29
        %p378 = scmp.lt.s32.totalorder %s28, 1
        %s379 = scalar_select %p378, %s28, 1
        %p380 = scmp.lt.s32.totalorder %s377, 7
        %s381 = scalar_select %p380, %s377, 7
        %s382 = smul.addr %s381, 2
        %s383 = smul.addr %s379, 16
        %s384 = sadd.s32 %s382, %s383
        %s385 = smul.addr %s384, 4
        %s386 = scalar_lea.vmem %s0, %s385
        %s387 = smul.u32 8, %s29
        %p390 = scmp.eq.s32.totalorder %s29, 0
        // Predicated region
        $region61: #{net_forward.1} parent=59 // pred_check
          %p391 = pneg %p390
        $region62: #{net_forward.1} parent=59 // pred_check_branch
          %393 = sbr.rel (%p391) target = $region64
        $region63: #{net_forward.1} parent=59 // pred_region
          %394 = vst [vmem:[#allocation2] sm:$0xff] 0.0
          %vm395 = vcmask 556032
          %396 = vst.msk [vmem:[#allocation2 + $0x8] sm:$0xff] %vm395, 0.0
        $region64: #{net_forward.1} parent=59 // pred_fallthru
          _
        %v397 = vld [vmem:[#allocation2] sm:$0xff]
        %v398 = vld [vmem:[#allocation2 + $0x8] sm:$0xff]
        %v399 = vld [vmem:[%s386] sm:$0xff]
        %v400 = vld [vmem:[%s386 + $0x8] sm:$0xff]
        %v401 = vld [vmem:[%s386 + $0x10] sm:$0xff]
        %v402 = vld [vmem:[%s386 + $0x18] sm:$0xff]
        %v403 = vld [vmem:[%s386 + $0x20] sm:$0xff]
        %v404 = vld [vmem:[%s386 + $0x28] sm:$0xff]
        %v405 = vld [vmem:[%s386 + $0x30] sm:$0xff]
        %v406 = vld [vmem:[%s386 + $0x38] sm:$0xff]
        %v415 = vunpack.c.l.b16 %v399
        %v416 = vunpack.c.h.b16 %v399
        %v417 = vunpack.c.l.b16 %v400
        %v418 = vunpack.c.h.b16 %v400
        %v419 = vunpack.c.l.b16 %v401
        %v420 = vunpack.c.h.b16 %v401
        %v421 = vunpack.c.l.b16 %v402
        %v422 = vunpack.c.h.b16 %v402
        %v423 = vunpack.c.l.b16 %v403
        %v424 = vunpack.c.h.b16 %v403
        %v425 = vunpack.c.l.b16 %v404
        %v426 = vunpack.c.h.b16 %v404
        %v427 = vunpack.c.l.b16 %v405
        %v428 = vunpack.c.h.b16 %v405
        %v429 = vunpack.c.l.b16 %v406
        %v430 = vunpack.c.h.b16 %v406
        %v431 = vpack.c.b16 %v417, %v415
        %v432 = vpack.c.b16 %v418, %v416
        %v433 = vpack.c.b16 %v421, %v419
        %v434 = vpack.c.b16 %v422, %v420
        %v435 = vpack.c.b16 %v425, %v423
        %v436 = vpack.c.b16 %v426, %v424
        %v437 = vpack.c.b16 %v429, %v427
        %v438 = vpack.c.b16 %v430, %v428
        %vm447 = vcmask 523264
        %v449 = vsel %vm447, 1065369472, 0
        %451 = vmatprep.subr.bf16.mxu0 0
        %452 = vmatpush1.bf16.msra.mxu0 0
        %453 = vmatprep.subr.bf16.mxu0 0
        %454 = vmatpush1.bf16.msra.mxu0 0
        %455 = vmatprep.subr.bf16.mxu0 0
        %456 = vmatpush1.bf16.msra.mxu0 0
        %457 = vmatprep.subr.bf16.mxu0 0
        %458 = vmatpush1.bf16.msra.mxu0 0
        %459 = vmatprep.subr.bf16.mxu0 %v438
        %460 = vmatpush1.bf16.msra.mxu0 %v437
        %461 = vmatprep.subr.bf16.mxu0 %v436
        %462 = vmatpush1.bf16.msra.mxu0 %v435
        %463 = vmatprep.subr.bf16.mxu0 %v434
        %464 = vmatpush1.bf16.msra.mxu0 %v433
        %465 = vmatprep.subr.bf16.mxu0 %v432
        %466 = vmatpush1.bf16.msra.mxu0 %v431
        %467 = vmatprep.subr.bf16.mxu0 0
        %468 = vmatpush2.bf16.msra.mxu0 0
        %469 = vmatprep.subr.bf16.mxu0 0
        %470 = vmatpush2.bf16.msra.mxu0 0
        %471 = vmatprep.subr.bf16.mxu0 0
        %472 = vmatpush2.bf16.msra.mxu0 0
        %473 = vmatprep.subr.bf16.mxu0 0
        %474 = vmatpush2.bf16.msra.mxu0 0
        %475 = vmatprep.subr.bf16.mxu0 0
        %476 = vmatpush2.bf16.msra.mxu0 0
        %477 = vmatprep.subr.bf16.mxu0 0
        %478 = vmatpush2.bf16.msra.mxu0 0
        %479 = vmatprep.subr.bf16.mxu0 0
        %480 = vmatpush2.bf16.msra.mxu0 0
        %481 = vmatprep.subr.bf16.mxu0 0
        %482 = vmatpush2.bf16.msra.mxu0 0
        %483 = vmatprep.mubr.bf16.mxu0 0
        %484 = vmatmul.mubr.bf16.gmra.mxu0 %v449
        %v485 = vpop.f32.mrf.mxu0
        %v486 = vadd.f32 0.0, %v485
        %v487 = vpop.f32.mrf.mxu0
        %v488 = vadd.f32 0.0, %v487
        %v489 = vpop.f32.mrf.mxu0
        %v490 = vpop.f32.mrf.mxu0
        %491 = vdwg.mxu0
        %v492 = vadd.f32 %v397, %v486
        %v493 = vadd.f32 %v398, %v488
        %494 = vst [vmem:[#allocation2] sm:$0xff] %v492
        %vm495 = vcmask 556032
        %496 = vst.msk [vmem:[#allocation2 + $0x8] sm:$0xff] %vm495, %v493
        // Predicated region
        $region65: #{net_forward.1} parent=59 // pred_check
          %p497 = pneg %p390
        $region66: #{net_forward.1} parent=59 // pred_check_branch
          %499 = sbr.rel (%p497) target = $region68
        $region67: #{net_forward.1} parent=59 // pred_region
          %v500 = vld [vmem:[#allocation2] sm:$0xff]
          %v501 = vld [vmem:[#allocation2 + $0x8] sm:$0xff]
          %v502 = vmul.f32 %v500, 0.015625
          %v503 = vmul.f32 %v501, 0.015625
          %v504 = vld [vmem:[%s1] sm:$0xff]
          %v505 = vld [vmem:[%s1 + $0x8] sm:$0xff]
          %v506 = vld [vmem:[%s1 + $0x10] sm:$0xff]
          %v507 = vld [vmem:[%s1 + $0x18] sm:$0xff]
          %v508 = vld [vmem:[%s1 + $0x20] sm:$0xff]
          %v509 = vld [vmem:[%s1 + $0x28] sm:$0xff]
          %v510 = vld [vmem:[%s1 + $0x30] sm:$0xff]
          %v511 = vld [vmem:[%s1 + $0x38] sm:$0xff]
          %v512 = vld [vmem:[%s1 + $0x40] sm:$0xff]
          %v513 = vld [vmem:[%s1 + $0x48] sm:$0xff]
          %v514 = vld [vmem:[%s1 + $0x50] sm:$0xff]
          %v515 = vld [vmem:[%s1 + $0x58] sm:$0xff]
          %v516 = vld [vmem:[%s1 + $0x60] sm:$0xff]
          %v517 = vld [vmem:[%s1 + $0x68] sm:$0xff]
          %v518 = vld [vmem:[%s1 + $0x70] sm:$0xff]
          %v519 = vld [vmem:[%s1 + $0x78] sm:$0xff]
          %v520 = vld [vmem:[%s1 + $0x80] sm:$0xff]
          %v521 = vld [vmem:[%s1 + $0x88] sm:$0xff]
          %v522 = vld [vmem:[%s1 + $0x90] sm:$0xff]
          %v523 = vld [vmem:[%s1 + $0x98] sm:$0xff]
          %v524 = vld [vmem:[%s1 + $0xa0] sm:$0xff]
          %v525 = vld [vmem:[%s1 + $0xa8] sm:$0xff]
          %v526 = vld [vmem:[%s1 + $0xb0] sm:$0xff]
          %v527 = vld [vmem:[%s1 + $0xb8] sm:$0xff]
          %v528 = vld [vmem:[%s1 + $0xc0] sm:$0xf]
          %v530 = vsel %vm495, %v503, 0
          %vm532 = vcmask 1043456
          %v534 = vsel %vm532, %v528, 0
          %536 = vmatprep.subr.mxu0 0.0
          %537 = vmatpush1.msra.mxu0 %v519
          %538 = vmatprep.subr.mxu0 0.0
          %539 = vmatpush1.msra.mxu0 %v518
          %540 = vmatprep.subr.mxu0 0.0
          %541 = vmatpush1.msra.mxu0 %v517
          %542 = vmatprep.subr.mxu0 0.0
          %543 = vmatpush1.msra.mxu0 %v516
          %544 = vmatprep.subr.mxu0 0.0
          %545 = vmatpush1.msra.mxu0 %v515
          %546 = vmatprep.subr.mxu0 0.0
          %547 = vmatpush1.msra.mxu0 %v514
          %548 = vmatprep.subr.mxu0 0.0
          %549 = vmatpush1.msra.mxu0 %v513
          %550 = vmatprep.subr.mxu0 0.0
          %551 = vmatpush1.msra.mxu0 %v512
          %552 = vmatprep.subr.mxu0 0.0
          %553 = vmatpush1.msra.mxu0 %v511
          %554 = vmatprep.subr.mxu0 0.0
          %555 = vmatpush1.msra.mxu0 %v510
          %556 = vmatprep.subr.mxu0 0.0
          %557 = vmatpush1.msra.mxu0 %v509
          %558 = vmatprep.subr.mxu0 0.0
          %559 = vmatpush1.msra.mxu0 %v508
          %560 = vmatprep.subr.mxu0 0.0
          %561 = vmatpush1.msra.mxu0 %v507
          %562 = vmatprep.subr.mxu0 0.0
          %563 = vmatpush1.msra.mxu0 %v506
          %564 = vmatprep.subr.mxu0 0.0
          %565 = vmatpush1.msra.mxu0 %v505
          %566 = vmatprep.subr.mxu0 0.0
          %567 = vmatpush1.msra.mxu0 %v504
          %568 = vmatprep.subr.mxu0 0.0
          %569 = vmatpush2.msra.mxu0 0.0
          %570 = vmatprep.subr.mxu0 0.0
          %571 = vmatpush2.msra.mxu0 0.0
          %572 = vmatprep.subr.mxu0 0.0
          %573 = vmatpush2.msra.mxu0 0.0
          %574 = vmatprep.subr.mxu0 0.0
          %575 = vmatpush2.msra.mxu0 0.0
          %576 = vmatprep.subr.mxu0 0.0
          %577 = vmatpush2.msra.mxu0 0.0
          %578 = vmatprep.subr.mxu0 0.0
          %579 = vmatpush2.msra.mxu0 0.0
          %580 = vmatprep.subr.mxu0 0.0
          %581 = vmatpush2.msra.mxu0 0.0
          %582 = vmatprep.subr.mxu0 0.0
          %583 = vmatpush2.msra.mxu0 %v534
          %584 = vmatprep.subr.mxu0 0.0
          %585 = vmatpush2.msra.mxu0 %v527
          %586 = vmatprep.subr.mxu0 0.0
          %587 = vmatpush2.msra.mxu0 %v526
          %588 = vmatprep.subr.mxu0 0.0
          %589 = vmatpush2.msra.mxu0 %v525
          %590 = vmatprep.subr.mxu0 0.0
          %591 = vmatpush2.msra.mxu0 %v524
          %592 = vmatprep.subr.mxu0 0.0
          %593 = vmatpush2.msra.mxu0 %v523
          %594 = vmatprep.subr.mxu0 0.0
          %595 = vmatpush2.msra.mxu0 %v522
          %596 = vmatprep.subr.mxu0 0.0
          %597 = vmatpush2.msra.mxu0 %v521
          %598 = vmatprep.subr.mxu0 0.0
          %599 = vmatpush2.msra.mxu0 %v520
          %600 = vmatprep.mubr.f32.mxu0 %v530
          %601 = vmatmul.mubr.f32.gmra.mxu0 %v502
          %v602 = vpop.f32.mrf.mxu0
          %v603 = vadd.f32 0.0, %v602
          %v604 = vpop.f32.mrf.mxu0
          %605 = vdwg.mxu0
          %v606 = vld [vmem:[%s2] sm:$0xff]
          %v607 = vld [vmem:[%s2 + $0x8] sm:$0xff]
          %v608 = vld [vmem:[%s2 + $0x10] sm:$0xff]
          %v609 = vld [vmem:[%s2 + $0x18] sm:$0xff]
          %v610 = vld [vmem:[%s2 + $0x20] sm:$0xff]
          %v611 = vld [vmem:[%s2 + $0x28] sm:$0xff]
          %v612 = vld [vmem:[%s2 + $0x30] sm:$0xff]
          %v613 = vld [vmem:[%s2 + $0x38] sm:$0xff]
          %v614 = vld [vmem:[%s2 + $0x40] sm:$0xff]
          %v615 = vld [vmem:[%s2 + $0x48] sm:$0xff]
          %v616 = vld [vmem:[%s2 + $0x50] sm:$0xff]
          %v617 = vld [vmem:[%s2 + $0x58] sm:$0xff]
          %v618 = vld [vmem:[%s2 + $0x60] sm:$0xff]
          %v619 = vld [vmem:[%s2 + $0x68] sm:$0xff]
          %v620 = vld [vmem:[%s2 + $0x70] sm:$0xff]
          %v621 = vld [vmem:[%s2 + $0x78] sm:$0xff]
          %v622 = vld [vmem:[%s3] sm:$0x1]
          %v624 = vlaneseq
          %v625 = vshrl.u32 %v624, 7
          %v626 = vsub.s32 0, %v625
          %v627 = vrot.slane %v622, %v626
          %629 = vmatprep.subr.mxu0 0.0
          %630 = vmatpush1.msra.mxu0 %v621
          %631 = vmatprep.subr.mxu0 0.0
          %632 = vmatpush1.msra.mxu0 %v620
          %633 = vmatprep.subr.mxu0 0.0
          %634 = vmatpush1.msra.mxu0 %v619
          %635 = vmatprep.subr.mxu0 0.0
          %636 = vmatpush1.msra.mxu0 %v618
          %637 = vmatprep.subr.mxu0 0.0
          %638 = vmatpush1.msra.mxu0 %v617
          %639 = vmatprep.subr.mxu0 0.0
          %640 = vmatpush1.msra.mxu0 %v616
          %641 = vmatprep.subr.mxu0 0.0
          %642 = vmatpush1.msra.mxu0 %v615
          %643 = vmatprep.subr.mxu0 0.0
          %644 = vmatpush1.msra.mxu0 %v614
          %645 = vmatprep.subr.mxu0 0.0
          %646 = vmatpush1.msra.mxu0 %v613
          %647 = vmatprep.subr.mxu0 0.0
          %648 = vmatpush1.msra.mxu0 %v612
          %649 = vmatprep.subr.mxu0 0.0
          %650 = vmatpush1.msra.mxu0 %v611
          %651 = vmatprep.subr.mxu0 0.0
          %652 = vmatpush1.msra.mxu0 %v610
          %653 = vmatprep.subr.mxu0 0.0
          %654 = vmatpush1.msra.mxu0 %v609
          %655 = vmatprep.subr.mxu0 0.0
          %656 = vmatpush1.msra.mxu0 %v608
          %657 = vmatprep.subr.mxu0 0.0
          %658 = vmatpush1.msra.mxu0 %v607
          %659 = vmatprep.subr.mxu0 0.0
          %660 = vmatpush1.msra.mxu0 %v606
          %661 = vmatprep.subr.mxu0 0.0
          %662 = vmatpush2.msra.mxu0 0.0
          %663 = vmatprep.subr.mxu0 0.0
          %664 = vmatpush2.msra.mxu0 0.0
          %665 = vmatprep.subr.mxu0 0.0
          %666 = vmatpush2.msra.mxu0 0.0
          %667 = vmatprep.subr.mxu0 0.0
          %668 = vmatpush2.msra.mxu0 0.0
          %669 = vmatprep.subr.mxu0 0.0
          %670 = vmatpush2.msra.mxu0 0.0
          %671 = vmatprep.subr.mxu0 0.0
          %672 = vmatpush2.msra.mxu0 0.0
          %673 = vmatprep.subr.mxu0 0.0
          %674 = vmatpush2.msra.mxu0 0.0
          %675 = vmatprep.subr.mxu0 0.0
          %676 = vmatpush2.msra.mxu0 0.0
          %677 = vmatprep.subr.mxu0 0.0
          %678 = vmatpush2.msra.mxu0 0.0
          %679 = vmatprep.subr.mxu0 0.0
          %680 = vmatpush2.msra.mxu0 0.0
          %681 = vmatprep.subr.mxu0 0.0
          %682 = vmatpush2.msra.mxu0 0.0
          %683 = vmatprep.subr.mxu0 0.0
          %684 = vmatpush2.msra.mxu0 0.0
          %685 = vmatprep.subr.mxu0 0.0
          %686 = vmatpush2.msra.mxu0 0.0
          %687 = vmatprep.subr.mxu0 0.0
          %688 = vmatpush2.msra.mxu0 0.0
          %689 = vmatprep.subr.mxu0 0.0
          %690 = vmatpush2.msra.mxu0 0.0
          %691 = vmatprep.subr.mxu0 0.0
          %692 = vmatpush2.msra.mxu0 0.0
          %693 = vmatprep.mubr.f32.mxu0 0.0
          %694 = vmatmul.mubr.f32.gmra.mxu0 %v603
          %v695 = vpop.f32.mrf.mxu0
          %v696 = vadd.f32 %v627, %v695
          %v697 = vpop.f32.mrf.mxu0
          %698 = vdwg.mxu0
          %vm699 = vcmp.gt.f32.partialorder %v696, 0.0
          %v700 = vmul.f32 %v696, 0.01
          %v701 = vsel %vm699, %v696, %v700
          %v702 = vld [vmem:[%s4] sm:$0xff]
          %v703 = vld [vmem:[%s4 + $0x8] sm:$0xff]
          %v704 = vld [vmem:[%s4 + $0x10] sm:$0xff]
          %v705 = vld [vmem:[%s4 + $0x18] sm:$0xff]
          %v706 = vld [vmem:[%s4 + $0x20] sm:$0xff]
          %v707 = vld [vmem:[%s4 + $0x28] sm:$0xff]
          %v708 = vld [vmem:[%s4 + $0x30] sm:$0xff]
          %v709 = vld [vmem:[%s4 + $0x38] sm:$0xff]
          %v710 = vld [vmem:[%s4 + $0x40] sm:$0xff]
          %v711 = vld [vmem:[%s4 + $0x48] sm:$0xff]
          %v712 = vld [vmem:[%s4 + $0x50] sm:$0xff]
          %v713 = vld [vmem:[%s4 + $0x58] sm:$0xff]
          %v714 = vld [vmem:[%s4 + $0x60] sm:$0xff]
          %v715 = vld [vmem:[%s4 + $0x68] sm:$0xff]
          %v716 = vld [vmem:[%s4 + $0x70] sm:$0xff]
          %v717 = vld [vmem:[%s4 + $0x78] sm:$0xff]
          %v718 = vld [vmem:[%s5] sm:$0x1]
          %v720 = vlaneseq
          %v721 = vshrl.u32 %v720, 7
          %v722 = vsub.s32 0, %v721
          %v723 = vrot.slane %v718, %v722
          %725 = vmatprep.subr.mxu0 0.0
          %726 = vmatpush1.msra.mxu0 %v717
          %727 = vmatprep.subr.mxu0 0.0
          %728 = vmatpush1.msra.mxu0 %v716
          %729 = vmatprep.subr.mxu0 0.0
          %730 = vmatpush1.msra.mxu0 %v715
          %731 = vmatprep.subr.mxu0 0.0
          %732 = vmatpush1.msra.mxu0 %v714
          %733 = vmatprep.subr.mxu0 0.0
          %734 = vmatpush1.msra.mxu0 %v713
          %735 = vmatprep.subr.mxu0 0.0
          %736 = vmatpush1.msra.mxu0 %v712
          %737 = vmatprep.subr.mxu0 0.0
          %738 = vmatpush1.msra.mxu0 %v711
          %739 = vmatprep.subr.mxu0 0.0
          %740 = vmatpush1.msra.mxu0 %v710
          %741 = vmatprep.subr.mxu0 0.0
          %742 = vmatpush1.msra.mxu0 %v709
          %743 = vmatprep.subr.mxu0 0.0
          %744 = vmatpush1.msra.mxu0 %v708
          %745 = vmatprep.subr.mxu0 0.0
          %746 = vmatpush1.msra.mxu0 %v707
          %747 = vmatprep.subr.mxu0 0.0
          %748 = vmatpush1.msra.mxu0 %v706
          %749 = vmatprep.subr.mxu0 0.0
          %750 = vmatpush1.msra.mxu0 %v705
          %751 = vmatprep.subr.mxu0 0.0
          %752 = vmatpush1.msra.mxu0 %v704
          %753 = vmatprep.subr.mxu0 0.0
          %754 = vmatpush1.msra.mxu0 %v703
          %755 = vmatprep.subr.mxu0 0.0
          %756 = vmatpush1.msra.mxu0 %v702
          %757 = vmatprep.subr.mxu0 0.0
          %758 = vmatpush2.msra.mxu0 0.0
          %759 = vmatprep.subr.mxu0 0.0
          %760 = vmatpush2.msra.mxu0 0.0
          %761 = vmatprep.subr.mxu0 0.0
          %762 = vmatpush2.msra.mxu0 0.0
          %763 = vmatprep.subr.mxu0 0.0
          %764 = vmatpush2.msra.mxu0 0.0
          %765 = vmatprep.subr.mxu0 0.0
          %766 = vmatpush2.msra.mxu0 0.0
          %767 = vmatprep.subr.mxu0 0.0
          %768 = vmatpush2.msra.mxu0 0.0
          %769 = vmatprep.subr.mxu0 0.0
          %770 = vmatpush2.msra.mxu0 0.0
          %771 = vmatprep.subr.mxu0 0.0
          %772 = vmatpush2.msra.mxu0 0.0
          %773 = vmatprep.subr.mxu0 0.0
          %774 = vmatpush2.msra.mxu0 0.0
          %775 = vmatprep.subr.mxu0 0.0
          %776 = vmatpush2.msra.mxu0 0.0
          %777 = vmatprep.subr.mxu0 0.0
          %778 = vmatpush2.msra.mxu0 0.0
          %779 = vmatprep.subr.mxu0 0.0
          %780 = vmatpush2.msra.mxu0 0.0
          %781 = vmatprep.subr.mxu0 0.0
          %782 = vmatpush2.msra.mxu0 0.0
          %783 = vmatprep.subr.mxu0 0.0
          %784 = vmatpush2.msra.mxu0 0.0
          %785 = vmatprep.subr.mxu0 0.0
          %786 = vmatpush2.msra.mxu0 0.0
          %787 = vmatprep.subr.mxu0 0.0
          %788 = vmatpush2.msra.mxu0 0.0
          %789 = vmatprep.mubr.f32.mxu0 0.0
          %790 = vmatmul.mubr.f32.gmra.mxu0 %v701
          %v791 = vpop.f32.mrf.mxu0
          %v792 = vadd.f32 %v723, %v791
          %v793 = vpop.f32.mrf.mxu0
          %794 = vdwg.mxu0
          %vm795 = vcmp.gt.f32.partialorder %v792, 0.0
          %v796 = vmul.f32 %v792, 0.01
          %v797 = vsel %vm795, %v792, %v796
          %v798 = vld [vmem:[%s6] sm:$0xff]
          %v799 = vld [vmem:[%s6 + $0x8] sm:$0xff]
          %v800 = vld [vmem:[%s6 + $0x10] sm:$0xff]
          %v801 = vld [vmem:[%s6 + $0x18] sm:$0xff]
          %v802 = vld [vmem:[%s6 + $0x20] sm:$0xff]
          %v803 = vld [vmem:[%s6 + $0x28] sm:$0xff]
          %v804 = vld [vmem:[%s6 + $0x30] sm:$0xff]
          %v805 = vld [vmem:[%s6 + $0x38] sm:$0xff]
          %v806 = vld [vmem:[%s6 + $0x40] sm:$0xff]
          %v807 = vld [vmem:[%s6 + $0x48] sm:$0xff]
          %v808 = vld [vmem:[%s6 + $0x50] sm:$0xff]
          %v809 = vld [vmem:[%s6 + $0x58] sm:$0xff]
          %v810 = vld [vmem:[%s6 + $0x60] sm:$0xff]
          %v811 = vld [vmem:[%s6 + $0x68] sm:$0xff]
          %v812 = vld [vmem:[%s6 + $0x70] sm:$0xff]
          %v813 = vld [vmem:[%s6 + $0x78] sm:$0xff]
          %v814 = vld [vmem:[%s7] sm:$0x1]
          %v816 = vlaneseq
          %v817 = vshrl.u32 %v816, 7
          %v818 = vsub.s32 0, %v817
          %v819 = vrot.slane %v814, %v818
          %821 = vmatprep.subr.mxu0 0.0
          %822 = vmatpush1.msra.mxu0 %v813
          %823 = vmatprep.subr.mxu0 0.0
          %824 = vmatpush1.msra.mxu0 %v812
          %825 = vmatprep.subr.mxu0 0.0
          %826 = vmatpush1.msra.mxu0 %v811
          %827 = vmatprep.subr.mxu0 0.0
          %828 = vmatpush1.msra.mxu0 %v810
          %829 = vmatprep.subr.mxu0 0.0
          %830 = vmatpush1.msra.mxu0 %v809
          %831 = vmatprep.subr.mxu0 0.0
          %832 = vmatpush1.msra.mxu0 %v808
          %833 = vmatprep.subr.mxu0 0.0
          %834 = vmatpush1.msra.mxu0 %v807
          %835 = vmatprep.subr.mxu0 0.0
          %836 = vmatpush1.msra.mxu0 %v806
          %837 = vmatprep.subr.mxu0 0.0
          %838 = vmatpush1.msra.mxu0 %v805
          %839 = vmatprep.subr.mxu0 0.0
          %840 = vmatpush1.msra.mxu0 %v804
          %841 = vmatprep.subr.mxu0 0.0
          %842 = vmatpush1.msra.mxu0 %v803
          %843 = vmatprep.subr.mxu0 0.0
          %844 = vmatpush1.msra.mxu0 %v802
          %845 = vmatprep.subr.mxu0 0.0
          %846 = vmatpush1.msra.mxu0 %v801
          %847 = vmatprep.subr.mxu0 0.0
          %848 = vmatpush1.msra.mxu0 %v800
          %849 = vmatprep.subr.mxu0 0.0
          %850 = vmatpush1.msra.mxu0 %v799
          %851 = vmatprep.subr.mxu0 0.0
          %852 = vmatpush1.msra.mxu0 %v798
          %853 = vmatprep.subr.mxu0 0.0
          %854 = vmatpush2.msra.mxu0 0.0
          %855 = vmatprep.subr.mxu0 0.0
          %856 = vmatpush2.msra.mxu0 0.0
          %857 = vmatprep.subr.mxu0 0.0
          %858 = vmatpush2.msra.mxu0 0.0
          %859 = vmatprep.subr.mxu0 0.0
          %860 = vmatpush2.msra.mxu0 0.0
          %861 = vmatprep.subr.mxu0 0.0
          %862 = vmatpush2.msra.mxu0 0.0
          %863 = vmatprep.subr.mxu0 0.0
          %864 = vmatpush2.msra.mxu0 0.0
          %865 = vmatprep.subr.mxu0 0.0
          %866 = vmatpush2.msra.mxu0 0.0
          %867 = vmatprep.subr.mxu0 0.0
          %868 = vmatpush2.msra.mxu0 0.0
          %869 = vmatprep.subr.mxu0 0.0
          %870 = vmatpush2.msra.mxu0 0.0
          %871 = vmatprep.subr.mxu0 0.0
          %872 = vmatpush2.msra.mxu0 0.0
          %873 = vmatprep.subr.mxu0 0.0
          %874 = vmatpush2.msra.mxu0 0.0
          %875 = vmatprep.subr.mxu0 0.0
          %876 = vmatpush2.msra.mxu0 0.0
          %877 = vmatprep.subr.mxu0 0.0
          %878 = vmatpush2.msra.mxu0 0.0
          %879 = vmatprep.subr.mxu0 0.0
          %880 = vmatpush2.msra.mxu0 0.0
          %881 = vmatprep.subr.mxu0 0.0
          %882 = vmatpush2.msra.mxu0 0.0
          %883 = vmatprep.subr.mxu0 0.0
          %884 = vmatpush2.msra.mxu0 0.0
          %885 = vmatprep.mubr.f32.mxu0 0.0
          %886 = vmatmul.mubr.f32.gmra.mxu0 %v797
          %v887 = vpop.f32.mrf.mxu0
          %v888 = vadd.f32 %v819, %v887
          %v889 = vpop.f32.mrf.mxu0
          %890 = vdwg.mxu0
          %vm891 = vcmp.gt.f32.partialorder %v888, 0.0
          %v892 = vmul.f32 %v888, 0.01
          %v893 = vsel %vm891, %v888, %v892
          %v894 = vld [vmem:[%s8] sm:$0xff]
          %v895 = vld [vmem:[%s8 + $0x8] sm:$0xff]
          %v896 = vld [vmem:[%s8 + $0x10] sm:$0xff]
          %v897 = vld [vmem:[%s8 + $0x18] sm:$0xff]
          %v898 = vld [vmem:[%s8 + $0x20] sm:$0xff]
          %v899 = vld [vmem:[%s8 + $0x28] sm:$0xff]
          %v900 = vld [vmem:[%s8 + $0x30] sm:$0xff]
          %v901 = vld [vmem:[%s8 + $0x38] sm:$0xff]
          %v902 = vld [vmem:[%s8 + $0x40] sm:$0xff]
          %v903 = vld [vmem:[%s8 + $0x48] sm:$0xff]
          %v904 = vld [vmem:[%s8 + $0x50] sm:$0xff]
          %v905 = vld [vmem:[%s8 + $0x58] sm:$0xff]
          %v906 = vld [vmem:[%s8 + $0x60] sm:$0xff]
          %v907 = vld [vmem:[%s8 + $0x68] sm:$0xff]
          %v908 = vld [vmem:[%s8 + $0x70] sm:$0xff]
          %v909 = vld [vmem:[%s8 + $0x78] sm:$0xff]
          %v910 = vld [vmem:[%s9] sm:$0x1]
          %v912 = vlaneseq
          %v913 = vshrl.u32 %v912, 7
          %v914 = vsub.s32 0, %v913
          %v915 = vrot.slane %v910, %v914
          %917 = vmatprep.subr.mxu0 0.0
          %918 = vmatpush1.msra.mxu0 %v909
          %919 = vmatprep.subr.mxu0 0.0
          %920 = vmatpush1.msra.mxu0 %v908
          %921 = vmatprep.subr.mxu0 0.0
          %922 = vmatpush1.msra.mxu0 %v907
          %923 = vmatprep.subr.mxu0 0.0
          %924 = vmatpush1.msra.mxu0 %v906
          %925 = vmatprep.subr.mxu0 0.0
          %926 = vmatpush1.msra.mxu0 %v905
          %927 = vmatprep.subr.mxu0 0.0
          %928 = vmatpush1.msra.mxu0 %v904
          %929 = vmatprep.subr.mxu0 0.0
          %930 = vmatpush1.msra.mxu0 %v903
          %931 = vmatprep.subr.mxu0 0.0
          %932 = vmatpush1.msra.mxu0 %v902
          %933 = vmatprep.subr.mxu0 0.0
          %934 = vmatpush1.msra.mxu0 %v901
          %935 = vmatprep.subr.mxu0 0.0
          %936 = vmatpush1.msra.mxu0 %v900
          %937 = vmatprep.subr.mxu0 0.0
          %938 = vmatpush1.msra.mxu0 %v899
          %939 = vmatprep.subr.mxu0 0.0
          %940 = vmatpush1.msra.mxu0 %v898
          %941 = vmatprep.subr.mxu0 0.0
          %942 = vmatpush1.msra.mxu0 %v897
          %943 = vmatprep.subr.mxu0 0.0
          %944 = vmatpush1.msra.mxu0 %v896
          %945 = vmatprep.subr.mxu0 0.0
          %946 = vmatpush1.msra.mxu0 %v895
          %947 = vmatprep.subr.mxu0 0.0
          %948 = vmatpush1.msra.mxu0 %v894
          %949 = vmatprep.subr.mxu0 0.0
          %950 = vmatpush2.msra.mxu0 0.0
          %951 = vmatprep.subr.mxu0 0.0
          %952 = vmatpush2.msra.mxu0 0.0
          %953 = vmatprep.subr.mxu0 0.0
          %954 = vmatpush2.msra.mxu0 0.0
          %955 = vmatprep.subr.mxu0 0.0
          %956 = vmatpush2.msra.mxu0 0.0
          %957 = vmatprep.subr.mxu0 0.0
          %958 = vmatpush2.msra.mxu0 0.0
          %959 = vmatprep.subr.mxu0 0.0
          %960 = vmatpush2.msra.mxu0 0.0
          %961 = vmatprep.subr.mxu0 0.0
          %962 = vmatpush2.msra.mxu0 0.0
          %963 = vmatprep.subr.mxu0 0.0
          %964 = vmatpush2.msra.mxu0 0.0
          %965 = vmatprep.subr.mxu0 0.0
          %966 = vmatpush2.msra.mxu0 0.0
          %967 = vmatprep.subr.mxu0 0.0
          %968 = vmatpush2.msra.mxu0 0.0
          %969 = vmatprep.subr.mxu0 0.0
          %970 = vmatpush2.msra.mxu0 0.0
          %971 = vmatprep.subr.mxu0 0.0
          %972 = vmatpush2.msra.mxu0 0.0
          %973 = vmatprep.subr.mxu0 0.0
          %974 = vmatpush2.msra.mxu0 0.0
          %975 = vmatprep.subr.mxu0 0.0
          %976 = vmatpush2.msra.mxu0 0.0
          %977 = vmatprep.subr.mxu0 0.0
          %978 = vmatpush2.msra.mxu0 0.0
          %979 = vmatprep.subr.mxu0 0.0
          %980 = vmatpush2.msra.mxu0 0.0
          %981 = vmatprep.mubr.f32.mxu0 0.0
          %982 = vmatmul.mubr.f32.gmra.mxu0 %v893
          %v983 = vpop.f32.mrf.mxu0
          %v984 = vadd.f32 %v915, %v983
          %v985 = vpop.f32.mrf.mxu0
          %986 = vdwg.mxu0
          %vm987 = vcmp.gt.f32.partialorder %v984, 0.0
          %v988 = vmul.f32 %v984, 0.01
          %v989 = vsel %vm987, %v984, %v988
          %990 = vst [vmem:[%s376] sm:$0x1] %v989
        $region68: #{net_forward.1} parent=59 // pred_fallthru
          _
        %s991 = sand.u32 %s261, 1
        %s992 = scalar_lea.sflag [#allocation4], %s991
        %s993 = sand.u32 %s261, 1
        %s994 = scalar_lea.vmem [#allocation3], %s993
        // Predicated region
        $region69: #{net_forward.1} parent=59 // pred_check
          %p995 = pneg %p271
        $region70: #{net_forward.1} parent=59 // pred_check_branch
          %997 = sbr.rel (%p995) target = $region72
        $region71: #{net_forward.1} parent=59 // pred_region
          %s999 = ssub.s32 16, 16
          %1000 = vsyncadd %s992, %s999
          %s1001 = smul.addr %s28, 16
          %s1002 = scalar_lea.hbm %s10, %s1001
          %s1004 = sshll.u32 %s994, 4
          %s1005 = int_to_ptr.vmem [resolvable:$true] %s1004
          %1007 = dma.vmem_to_hbm [thread:$0]  %s1005, 16, %s1002, %s992
        $region72: #{net_forward.1} parent=59 // pred_fallthru
          _
      $region60: #{net_forward.1} parent=5 // pred_fallthru
        _
      %p1008 = scmp.le.s32.totalorder 2, %s19
      // Predicated region
      $region73: #{net_forward.1} parent=5 // pred_check
        %p1009 = pneg %p1008
      $region74: #{net_forward.1} parent=5 // pred_check_branch
        %1011 = sbr.rel (%p1009) target = $region76
      $region75: #{net_forward.1} parent=5 // pred_region
        %s1012 = ssub.s32 %s19, 2
        // Predicated region
        $region77: #{net_forward.1} parent=75 // pred_check
          %p1013 = pneg %p277
        $region78: #{net_forward.1} parent=75 // pred_check_branch
          %1015 = sbr.rel (%p1013) target = $region80
        $region79: #{net_forward.1} parent=75 // pred_region
          %s1016 = sand.u32 %s262, 1
          %s1017 = scalar_lea.sflag [#allocation4], %s1016
          %s1018 = sand.u32 %s262, 1
          %s1019 = scalar_lea.vmem [#allocation3], %s1018
          %1020 = dma.done %s1017, 16
        $region80: #{net_forward.1} parent=75 // pred_fallthru
          _
      $region76: #{net_forward.1} parent=5 // pred_fallthru
        _
    $region6: #{net_forward.1} parent=1 // loop_footer
      %s23 = sadd.s32 1, %s19
    $region7: #{net_forward.1} parent=1 // loop_footer_branch
      %18 = sbr.rel target = $region3
    $region8: #{net_forward.1} parent=1 // loop_exit
      _
    %1021 = vsyncpa [#allocation4], 1
    %s1022 = scalar_lea.sflag [#allocation4], 1
    %1023 = vsyncpa %s1022, 1

</llo_original>
